<compile_context>
chip_gen: v7x
topology: tpu7x:2x2x1
jax: 0.10.0
libtpu: 0.0.40
codegen_flags: <defaults>
</compile_context>

<pallas_src>
import jax
import jax.numpy as jnp
from jax.experimental import pallas as pl
from jax.experimental.pallas import tpu as pltpu


def _choose_tn(N, D, bins, *, max_tn=256, vmem_3d_budget=24 * 1024 * 1024):
    """Pick a batch tile: big enough to amortize per-step overhead, small enough that
    ~3 live f32 copies of the (tn, E_pad, D) intermediate fit a conservative VMEM
    budget (v7x has only 64 MiB physical), and such that the grid keeps >= 2 steps
    when the batch allows (v7x megacore)."""
    e_pad = -(-(bins + 1) // 8) * 8                 # edges padded to sublane multiple
    per_row = 3 * e_pad * D * 4                     # ~3 live f32 copies per batch row
    tn = min(max_tn, max(8, vmem_3d_budget // per_row))
    tn = max(8, (int(tn) // 8) * 8)
    two_step = ((((N + 1) // 2) + 7) // 8) * 8      # round_up(ceil(N/2), 8)
    return max(8, min(tn, two_step))


def soft_histogram_1d(x, *, bins=50, vmin=0.0, vmax=1.0, sigma=10.0, tn=None):
    """x: (N, D) float32 -> (N, bins) float32 soft histogram per row."""
    x = jnp.asarray(x, jnp.float32)
    N, D = x.shape
    delta = float(vmax - vmin) / float(bins)
    half_sigma = 0.5 * float(sigma)
    E = bins + 1                                    # number of shared bin edges

    if tn is None:
        tn = _choose_tn(N, D, bins)
    tn = max(8, (int(tn) // 8) * 8)

    n_pad = ((N + tn - 1) // tn) * tn               # pad batch to a tile multiple
    if n_pad != N:
        x = jnp.pad(x, ((0, n_pad - N), (0, 0)))
    grid = n_pad // tn

    def kernel(x_ref, o_ref):
        # Hoist sigma scaling onto the small (tn, D) tile (not the 3D tensor).
        xs = x_ref[...] * half_sigma                                   # (tn, D)
        # Scaled edges generated in-kernel: se_e = 0.5*sigma*(vmin + e*delta).
        e_idx = jax.lax.broadcasted_iota(jnp.int32, (E, 1), 0).astype(jnp.float32)
        se = half_sigma * (float(vmin) + delta * e_idx)                # (E, 1)
        # (tn, E, D): edges on sublanes, D dense on lanes.
        z = xs[:, None, :] - se[None, :, :]
        t = jnp.tanh(z)                          # single EUP op per element
        s = jnp.sum(t, axis=-1)                  # (tn, E)  cross-lane reduce (XLU)
        # Adjacent-edge difference; the 0.5*D terms of the sigmoid identity cancel.
        o_ref[...] = 0.5 * (s[:, :bins] - s[:, 1:])                    # (tn, bins)

    # NOTE: for very large D the (tn, E, D) working set should be blocked with an
    # inner "arbitrary" D grid axis and a (tn, E) accumulator; not needed here.
    out = pl.pallas_call(
        kernel,
        out_shape=jax.ShapeDtypeStruct((n_pad, bins), jnp.float32),
        grid=(grid,),
        in_specs=[pl.BlockSpec((tn, D), lambda i: (i, 0))],
        out_specs=pl.BlockSpec((tn, bins), lambda i: (i, 0)),
        compiler_params=pltpu.CompilerParams(
            dimension_semantics=("parallel",),
            vmem_limit_bytes=48 * 1024 * 1024,  # > v5e's 16 MiB default, < v7x's 64 MiB
        ),
    )(x)
    return out[:N] if n_pad != N else out


def soft_histogram_1d_ref(x, *, bins=50, vmin=0.0, vmax=1.0, sigma=10.0):
    """Pure-JAX reference mirroring the PyTorch forward exactly."""
    delta = float(vmax - vmin) / float(bins)
    centers = float(vmin) + delta * (jnp.arange(bins, dtype=jnp.float32) + 0.5)
    d = x[:, None, :] - centers[None, :, None]
    h = jax.nn.sigmoid(sigma * (d + delta / 2)) - jax.nn.sigmoid(sigma * (d - delta / 2))
    return h.sum(axis=-1)


if __name__ == "__main__":
    key = jax.random.PRNGKey(0)
    N, D, BINS = 16, 256, 50
    x = jax.random.uniform(key, (N, D), dtype=jnp.float32)   # values in [0, 1)

    out = soft_histogram_1d(x, bins=BINS, vmin=0.0, vmax=1.0, sigma=10.0)
    out = jax.block_until_ready(out)
    ref = soft_histogram_1d_ref(x, bins=BINS, vmin=0.0, vmax=1.0, sigma=10.0)
    assert out.shape == (N, BINS)
    assert jnp.allclose(out, ref, atol=1e-3, rtol=1e-3), "mismatch vs reference"

    # Non-divisible batch / smaller D exercises the padding path (no N % tn assert).
    x2 = jax.random.uniform(jax.random.PRNGKey(1), (13, 96), dtype=jnp.float32)
    out2 = jax.block_until_ready(soft_histogram_1d(x2, bins=BINS))
    ref2 = soft_histogram_1d_ref(x2, bins=BINS)
    assert out2.shape == (13, BINS)
    assert jnp.allclose(out2, ref2, atol=1e-3, rtol=1e-3), "mismatch vs reference (padded)"

    print("KERNEL_OK")
</pallas_src>

<mosaic_0001>
module attributes {stable_mosaic.version = 11 : i64} {
  func.func @kernel(%arg0: i32, %arg1: memref<8x256xf32, #tpu.memory_space<vmem>>, %arg2: memref<8x50xf32, #tpu.memory_space<vmem>>) attributes {dimension_semantics = [#tpu.dimension_semantics<parallel>], iteration_bounds = array<i64: 2>, scalar_prefetch = 0 : i64, scratch_operands = 0 : i64, tpu.core_type = #tpu.core_type<tc>, window_params = [{transform_indices = @transform_0, window_bounds = array<i64: 8, 256>}, {transform_indices = @transform_1, window_bounds = array<i64: 8, 50>}]} {
    %c0 = arith.constant 0 : index
    %c0_0 = arith.constant 0 : index
    %0 = vector.load %arg1[%c0, %c0_0] : memref<8x256xf32, #tpu.memory_space<vmem>>, vector<8x256xf32>
    %cst = arith.constant 5.000000e+00 : f32
    %1 = vector.broadcast %cst : f32 to vector<8x256xf32>
    %2 = arith.mulf %0, %1 : vector<8x256xf32>
    %3 = tpu.iota {dimensions = array<i32: 0>} : vector<51x1xi32>
    %4 = arith.sitofp %3 : vector<51x1xi32> to vector<51x1xf32>
    %cst_1 = arith.constant 2.000000e-02 : f32
    %5 = vector.broadcast %cst_1 : f32 to vector<51x1xf32>
    %6 = arith.mulf %5, %4 : vector<51x1xf32>
    %cst_2 = arith.constant 0.000000e+00 : f32
    %7 = vector.broadcast %cst_2 : f32 to vector<51x1xf32>
    %8 = arith.addf %7, %6 : vector<51x1xf32>
    %cst_3 = arith.constant 5.000000e+00 : f32
    %9 = vector.broadcast %cst_3 : f32 to vector<51x1xf32>
    %10 = arith.mulf %9, %8 : vector<51x1xf32>
    %11 = vector.shape_cast %2 : vector<8x256xf32> to vector<8x1x256xf32>
    %12 = vector.shape_cast %10 : vector<51x1xf32> to vector<1x51x1xf32>
    %13 = vector.broadcast %11 : vector<8x1x256xf32> to vector<8x51x256xf32>
    %14 = vector.broadcast %12 : vector<1x51x1xf32> to vector<8x51x256xf32>
    %15 = arith.subf %13, %14 : vector<8x51x256xf32>
    %16 = math.tanh %15 : vector<8x51x256xf32>
    %cst_4 = arith.constant dense<0.000000e+00> : vector<8x51xf32>
    %17 = vector.multi_reduction <add>, %16, %cst_4 [2] : vector<8x51x256xf32> to vector<8x51xf32>
    %18 = vector.extract_strided_slice %17 {offsets = [0, 0], sizes = [8, 50], strides = [1, 1]} : vector<8x51xf32> to vector<8x50xf32>
    %19 = vector.extract_strided_slice %17 {offsets = [0, 1], sizes = [8, 50], strides = [1, 1]} : vector<8x51xf32> to vector<8x50xf32>
    %20 = arith.subf %18, %19 : vector<8x50xf32>
    %cst_5 = arith.constant 5.000000e-01 : f32
    %21 = vector.broadcast %cst_5 : f32 to vector<8x50xf32>
    %22 = arith.mulf %21, %20 : vector<8x50xf32>
    %c0_6 = arith.constant 0 : index
    %c0_7 = arith.constant 0 : index
    %23 = vector.load %arg2[%c0_6, %c0_7] : memref<8x50xf32, #tpu.memory_space<vmem>>, vector<8x50xf32>
    tpu.vector_store %arg2[%c0_6, %c0_7], %22 {strides = array<i32>} : memref<8x50xf32, #tpu.memory_space<vmem>>, vector<8x50xf32>,
    return
  }
  func.func @transform_0(%arg0: i32) -> (i32, i32) {
    %c0_i32 = arith.constant 0 : i32
    %c0_i32_0 = arith.constant 0 : i32
    return %arg0, %c0_i32 : i32, i32
  }
  func.func @transform_1(%arg0: i32) -> (i32, i32) {
    %c0_i32 = arith.constant 0 : i32
    %c0_i32_0 = arith.constant 0 : i32
    return %arg0, %c0_i32 : i32, i32
  }
}

</mosaic_0001>

<llo_original>
// kernel: tpu_custom_call.1
$region0: #{tpu_custom_call.1}
  #allocation0 [shape = 'u32[]', space=smem, size = 0x4, offset = 0x4, fixed_abs, tag = 'smem constant byte address 0x4 - core index']
  #allocation1 [shape = 'u32[144,128]{1,0:T(1,128)}', space=vmem, size = 0x12000, scoped, tag = 'internal scratch']
  %s0 = inlined_call_operand.hbm [shape: f32[16,256], index: 0, kind: input, shape index: {}]
  %s1 = inlined_call_operand.hbm [shape: f32[16,50], index: 1, kind: output, shape index: {}]
  %s2 = sld [smem:[#allocation0]]
  $region41: #{tpu_custom_call.1} parent=0
    _
  %s4 = ssub.s32 1, %s2
  %s5 = scalar_select 0, %s4, %s2
  $region1: #{tpu_custom_call.1} parent=0
    #allocation2 [shape = 'u8[16384]{0}', space=vmem, size = 0x4000, scoped, tag = 'input window, operand 0']
    #allocation3 [shape = 's32[2]{0}', space=sflag, size = 0x8, scoped, tag = 'scoped memory for tpu_custom_call.1']
    #allocation4 [shape = 's32[2]{0}', space=sflag, size = 0x8, scoped, tag = 'scoped memory for tpu_custom_call.1']
    #allocation5 [shape = 'u8[8192]{0}', space=vmem, size = 0x2000, scoped, tag = 'output window, operand 0']
    %6 = vsyncpa [#allocation3], 0
    %s7 = scalar_lea.sflag [#allocation3], 1
    %8 = vsyncpa %s7, 0
    %9 = vsyncpa [#allocation4], 0
    %s10 = scalar_lea.sflag [#allocation4], 1
    %11 = vsyncpa %s10, 0
    loop: start=0, step=1, limit=4
    $region2: #{tpu_custom_call.1} parent=1 // loop_pre_header
      _
    $region3: #{tpu_custom_call.1} parent=1 // loop_header
      %s13 = sphi 0, %s17
      %p14 = scmp.ge.s32.totalorder %s13, 4
      %s23 = sphi 0, %s25
      %s26 = sphi 0, %s23
      %s27 = sphi 0, %s26
      %s43 = sphi 0, %s27
      %s49 = sphi 0, %s51
      %s52 = sphi 0, %s49
      %s53 = sphi 0, %s52
      %s69 = sphi 0, %s53
    $region4: #{tpu_custom_call.1} parent=1 // loop_header_branch
      %16 = sbr.rel (%p14) target = $region8
    $region5: #{tpu_custom_call.1} parent=1 // loop_body
      %s18 = ssub.s32 %s13, 1
      %s19 = ssub.s32 %s13, 2
      %s20 = sadd.s32 %s13, 1
      %s21 = ssub.s32 %s13, %s20
      %p22 = scmp.eq.s32.totalorder %s21, 0
      %s24 = sadd.s32 %s23, 1
      %s25 = scalar_select %p22, %s23, %s24
      %p28 = pneg %p22
      %p29 = scmp.eq.s32.totalorder %s13, 1
      %p30 = por %p28, %p29
      %p31 = scmp.ne.s32.totalorder %s23, %s26
      %p32 = scmp.eq.s32.totalorder %s13, 0
      %p33 = por %p31, %p32
      %p34 = scmp.ne.s32.totalorder %s23, %s26
      %p35 = scmp.eq.s32.totalorder %s18, 1
      %p36 = por %p34, %p35
      %p37 = scmp.ne.s32.totalorder %s26, %s27
      %p38 = scmp.eq.s32.totalorder %s18, 0
      %p39 = por %p37, %p38
      %p40 = scmp.ne.s32.totalorder %s26, %s27
      %p41 = scmp.eq.s32.totalorder %s19, 1
      %p42 = por %p40, %p41
      %p44 = scmp.ne.s32.totalorder %s27, %s43
      %p45 = scmp.eq.s32.totalorder %s19, 0
      %p46 = por %p44, %p45
      %s47 = ssub.s32 %s13, %s20
      %p48 = scmp.eq.s32.totalorder %s47, 0
      %s50 = sadd.s32 %s49, 1
      %s51 = scalar_select %p48, %s49, %s50
      %p54 = pneg %p48
      %p55 = scmp.eq.s32.totalorder %s13, 1
      %p56 = por %p54, %p55
      %p57 = scmp.ne.s32.totalorder %s49, %s52
      %p58 = scmp.eq.s32.totalorder %s13, 0
      %p59 = por %p57, %p58
      %p60 = scmp.ne.s32.totalorder %s49, %s52
      %p61 = scmp.eq.s32.totalorder %s18, 1
      %p62 = por %p60, %p61
      %p63 = scmp.ne.s32.totalorder %s52, %s53
      %p64 = scmp.eq.s32.totalorder %s18, 0
      %p65 = por %p63, %p64
      %p66 = scmp.ne.s32.totalorder %s52, %s53
      %p67 = scmp.eq.s32.totalorder %s19, 1
      %p68 = por %p66, %p67
      %p70 = scmp.ne.s32.totalorder %s53, %s69
      %p71 = scmp.eq.s32.totalorder %s19, 0
      %p72 = por %p70, %p71
      %p73 = scmp.le.s32.totalorder 1, %s13
      %p74 = scmp.lt.s32.totalorder %s13, 3
      %p75 = pnand %p73, %p74
      %p76 = pneg %p75
      // Predicated region
      $region9: #{tpu_custom_call.1} parent=5 // pred_check
        _
      $region10: #{tpu_custom_call.1} parent=5 // pred_check_branch
        %78 = sbr.rel (%p75) target = $region12
      $region11: #{tpu_custom_call.1} parent=5 // pred_region
        %s79 = ssub.s32 %s13, 1
      $region12: #{tpu_custom_call.1} parent=5 // pred_fallthru
        _
      %p80 = scmp.lt.s32.totalorder %s13, 2
      // Predicated region
      $region13: #{tpu_custom_call.1} parent=5 // pred_check
        %p81 = pneg %p80
      $region14: #{tpu_custom_call.1} parent=5 // pred_check_branch
        %83 = sbr.rel (%p81) target = $region16
      $region15: #{tpu_custom_call.1} parent=5 // pred_region
        // Predicated region
        $region17: #{tpu_custom_call.1} parent=15 // pred_check
          %p84 = pneg %p33
        $region18: #{tpu_custom_call.1} parent=15 // pred_check_branch
          %86 = sbr.rel (%p84) target = $region20
        $region19: #{tpu_custom_call.1} parent=15 // pred_region
          %s87 = sand.u32 %s23, 1
          %s88 = scalar_lea.sflag [#allocation3], %s87
          %s89 = sand.u32 %s23, 1
          %s90 = smul.addr %s89, 16
          %s91 = scalar_lea.vmem [#allocation2], %s90
          %s93 = ssub.s32 256, 256
          %94 = vsyncadd %s88, %s93
          %s95 = smul.addr %s13, 2
          %s96 = smul.addr %s95, 128
          %s97 = scalar_lea.hbm %s0, %s96
          %s99 = sshll.u32 %s91, 4
          %s100 = int_to_ptr.vmem [resolvable:$true] %s99
          %102 = dma.hbm_to_vmem [thread:$0]  %s97, 256, %s100, %s88
        $region20: #{tpu_custom_call.1} parent=15 // pred_fallthru
          _
      $region16: #{tpu_custom_call.1} parent=5 // pred_fallthru
        _
      %p103 = scmp.le.s32.totalorder 1, %s13
      %p104 = scmp.lt.s32.totalorder %s13, 3
      %p105 = pnand %p103, %p104
      %p106 = pneg %p105
      // Predicated region
      $region21: #{tpu_custom_call.1} parent=5 // pred_check
        _
      $region22: #{tpu_custom_call.1} parent=5 // pred_check_branch
        %108 = sbr.rel (%p105) target = $region24
      $region23: #{tpu_custom_call.1} parent=5 // pred_region
        %s109 = ssub.s32 %s13, 1
        %s110 = sand.u32 %s26, 1
        %s111 = scalar_lea.sflag [#allocation3], %s110
        %s112 = sand.u32 %s26, 1
        %s113 = smul.addr %s112, 16
        %s114 = scalar_lea.vmem [#allocation2], %s113
        // Predicated region
        $region25: #{tpu_custom_call.1} parent=23 // pred_check
          %p115 = pneg %p39
        $region26: #{tpu_custom_call.1} parent=23 // pred_check_branch
          %117 = sbr.rel (%p115) target = $region28
        $region27: #{tpu_custom_call.1} parent=23 // pred_region
          %118 = dma.done %s111, 256
        $region28: #{tpu_custom_call.1} parent=23 // pred_fallthru
          _
        %s119 = sand.u32 %s26, 1
        %s120 = scalar_lea.sflag [#allocation3], %s119
        %s121 = sand.u32 %s26, 1
        %s122 = smul.addr %s121, 16
        %s123 = scalar_lea.vmem [#allocation2], %s122
        %p124 = pneg %p39
        %p125 = pneg %p36
        %p126 = pneg %p65
        %p127 = pneg %p62
        %s128 = sand.u32 %s52, 1
        %s129 = scalar_lea.sflag [#allocation4], %s128
        %s130 = sand.u32 %s52, 1
        %s131 = smul.addr %s130, 8
        %s132 = scalar_lea.vmem [#allocation5], %s131
        %v133 = vld [vmem:[%s114] sm:$0xff]
        %v134 = vld [vmem:[%s114 + $0x8] sm:$0xff]
        %v135 = vmul.f32 %v133, 5.0
        %v136 = vmul.f32 %v134, 5.0
        %v137 = vlaneseq
        %v138 = vshrl.u32 %v137, 7
        %v139 = vadd.s32 %v138, 8
        %v140 = vadd.s32 %v138, 16
        %v141 = vadd.s32 %v138, 24
        %v142 = vadd.s32 %v138, 32
        %v143 = vadd.s32 %v138, 40
        %v144 = vadd.s32 %v138, 48
        %v145 = vcvt.s32.f32 %v138
        %v146 = vcvt.s32.f32 %v139
        %v147 = vcvt.s32.f32 %v140
        %v148 = vcvt.s32.f32 %v141
        %v149 = vcvt.s32.f32 %v142
        %v150 = vcvt.s32.f32 %v143
        %v151 = vcvt.s32.f32 %v144
        %v152 = vmul.f32 %v145, 0.02
        %v153 = vmul.f32 %v146, 0.02
        %v154 = vmul.f32 %v147, 0.02
        %v155 = vmul.f32 %v148, 0.02
        %v156 = vmul.f32 %v149, 0.02
        %v157 = vmul.f32 %v150, 0.02
        %v158 = vmul.f32 %v151, 0.02
        %v159 = vadd.f32 %v152, 0.0
        %v160 = vadd.f32 %v153, 0.0
        %v161 = vadd.f32 %v154, 0.0
        %v162 = vadd.f32 %v155, 0.0
        %v163 = vadd.f32 %v156, 0.0
        %v164 = vadd.f32 %v157, 0.0
        %v165 = vadd.f32 %v158, 0.0
        %v166 = vmul.f32 %v159, 5.0
        %v167 = vmul.f32 %v160, 5.0
        %v168 = vmul.f32 %v161, 5.0
        %v169 = vmul.f32 %v162, 5.0
        %v170 = vmul.f32 %v163, 5.0
        %v171 = vmul.f32 %v164, 5.0
        %v172 = vmul.f32 %v165, 5.0
        %v175 = vcombine.low %v135, %v136
        %v176 = vcombine.high %v135, %v136
        %v178 = vunpack.c.l.s4 1966171168
        %v179 = vunpack.c.0.s8 %v178
        %v180 = vlaneseq
        %v181 = vshrl.u32 %v180, 7
        %v182 = vsub.s32 %v179, %v181
        %v183 = vrot.slane %v175, %v182
        %v185 = vunpack.c.l.s4 1966171168
        %v186 = vunpack.c.0.s8 %v185
        %v187 = vlaneseq
        %v188 = vshrl.u32 %v187, 7
        %v189 = vsub.s32 %v186, %v188
        %v190 = vrot.slane %v176, %v189
        %v191 = vcombine.high %v183, %v183
        %v192 = vcombine.high %v190, %v190
        %v194 = vunpack.c.l.s4 1966171168
        %v195 = vunpack.c.0.s8 %v194
        %v196 = vlaneseq
        %v197 = vshrl.u32 %v196, 7
        %v198 = vsub.s32 %v195, %v197
        %v199 = vrot.slane %v183, %v198
        %v201 = vunpack.c.l.s4 1966171168
        %v202 = vunpack.c.0.s8 %v201
        %v203 = vlaneseq
        %v204 = vshrl.u32 %v203, 7
        %v205 = vsub.s32 %v202, %v204
        %v206 = vrot.slane %v190, %v205
        %v208 = vunpack.c.l.s4 1966171168
        %v209 = vunpack.c.0.s8 %v208
        %v210 = vlaneseq
        %v211 = vshrl.u32 %v210, 7
        %v212 = vsub.s32 %v209, %v211
        %v213 = vrot.slane %v191, %v212
        %v215 = vunpack.c.l.s4 1966171168
        %v216 = vunpack.c.0.s8 %v215
        %v217 = vlaneseq
        %v218 = vshrl.u32 %v217, 7
        %v219 = vsub.s32 %v216, %v218
        %v220 = vrot.slane %v192, %v219
        %v221 = vcombine.high %v199, %v199
        %v222 = vcombine.high %v206, %v206
        %v223 = vcombine.high %v213, %v213
        %v224 = vcombine.high %v220, %v220
        %v225 = vlaneseq
        %v226 = vshrl.u32 %v225, 7
        %v227 = vsub.s32 0, %v226
        %v228 = vrot.slane %v199, %v227
        %v229 = vlaneseq
        %v230 = vshrl.u32 %v229, 7
        %v231 = vsub.s32 1, %v230
        %v232 = vrot.slane %v199, %v231
        %v233 = vlaneseq
        %v234 = vshrl.u32 %v233, 7
        %v235 = vsub.s32 0, %v234
        %v236 = vrot.slane %v213, %v235
        %v237 = vlaneseq
        %v238 = vshrl.u32 %v237, 7
        %v239 = vsub.s32 1, %v238
        %v240 = vrot.slane %v213, %v239
        %v241 = vlaneseq
        %v242 = vshrl.u32 %v241, 7
        %v243 = vsub.s32 0, %v242
        %v244 = vrot.slane %v221, %v243
        %v245 = vlaneseq
        %v246 = vshrl.u32 %v245, 7
        %v247 = vsub.s32 1, %v246
        %v248 = vrot.slane %v221, %v247
        %v249 = vlaneseq
        %v250 = vshrl.u32 %v249, 7
        %v251 = vsub.s32 0, %v250
        %v252 = vrot.slane %v223, %v251
        %v253 = vlaneseq
        %v254 = vshrl.u32 %v253, 7
        %v255 = vsub.s32 1, %v254
        %v256 = vrot.slane %v223, %v255
        %v257 = vlaneseq
        %v258 = vshrl.u32 %v257, 7
        %v259 = vsub.s32 0, %v258
        %v260 = vrot.slane %v206, %v259
        %v261 = vlaneseq
        %v262 = vshrl.u32 %v261, 7
        %v263 = vsub.s32 1, %v262
        %v264 = vrot.slane %v206, %v263
        %v265 = vlaneseq
        %v266 = vshrl.u32 %v265, 7
        %v267 = vsub.s32 0, %v266
        %v268 = vrot.slane %v220, %v267
        %v269 = vlaneseq
        %v270 = vshrl.u32 %v269, 7
        %v271 = vsub.s32 1, %v270
        %v272 = vrot.slane %v220, %v271
        %v273 = vlaneseq
        %v274 = vshrl.u32 %v273, 7
        %v275 = vsub.s32 0, %v274
        %v276 = vrot.slane %v222, %v275
        %v277 = vlaneseq
        %v278 = vshrl.u32 %v277, 7
        %v279 = vsub.s32 1, %v278
        %v280 = vrot.slane %v222, %v279
        %v281 = vlaneseq
        %v282 = vshrl.u32 %v281, 7
        %v283 = vsub.s32 0, %v282
        %v284 = vrot.slane %v224, %v283
        %v285 = vlaneseq
        %v286 = vshrl.u32 %v285, 7
        %v287 = vsub.s32 1, %v286
        %v288 = vrot.slane %v224, %v287
        %v305 = vsub.f32 %v228, %v166
        %v306 = vsub.f32 %v232, %v166
        %v307 = vsub.f32 %v228, %v167
        %v308 = vsub.f32 %v232, %v167
        %v309 = vsub.f32 %v228, %v168
        %v310 = vsub.f32 %v232, %v168
        %v311 = vsub.f32 %v228, %v169
        %v312 = vsub.f32 %v232, %v169
        %v313 = vsub.f32 %v228, %v170
        %v314 = vsub.f32 %v232, %v170
        %v315 = vsub.f32 %v228, %v171
        %v316 = vsub.f32 %v232, %v171
        %v317 = vsub.f32 %v228, %v172
        %v318 = vsub.f32 %v232, %v172
        %v319 = vsub.f32 %v236, %v166
        %v320 = vsub.f32 %v240, %v166
        %v321 = vsub.f32 %v236, %v167
        %v322 = vsub.f32 %v240, %v167
        %v323 = vsub.f32 %v236, %v168
        %v324 = vsub.f32 %v240, %v168
        %v325 = vsub.f32 %v236, %v169
        %v326 = vsub.f32 %v240, %v169
        %v327 = vsub.f32 %v236, %v170
        %v328 = vsub.f32 %v240, %v170
        %v329 = vsub.f32 %v236, %v171
        %v330 = vsub.f32 %v240, %v171
        %v331 = vsub.f32 %v236, %v172
        %v332 = vsub.f32 %v240, %v172
        %v333 = vsub.f32 %v244, %v166
        %v334 = vsub.f32 %v248, %v166
        %v335 = vsub.f32 %v244, %v167
        %v336 = vsub.f32 %v248, %v167
        %v337 = vsub.f32 %v244, %v168
        %v338 = vsub.f32 %v248, %v168
        %v339 = vsub.f32 %v244, %v169
        %v340 = vsub.f32 %v248, %v169
        %v341 = vsub.f32 %v244, %v170
        %v342 = vsub.f32 %v248, %v170
        %v343 = vsub.f32 %v244, %v171
        %v344 = vsub.f32 %v248, %v171
        %v345 = vsub.f32 %v244, %v172
        %v346 = vsub.f32 %v248, %v172
        %v347 = vsub.f32 %v252, %v166
        %v348 = vsub.f32 %v256, %v166
        %v349 = vsub.f32 %v252, %v167
        %v350 = vsub.f32 %v256, %v167
        %v351 = vsub.f32 %v252, %v168
        %v352 = vsub.f32 %v256, %v168
        %v353 = vsub.f32 %v252, %v169
        %v354 = vsub.f32 %v256, %v169
        %v355 = vsub.f32 %v252, %v170
        %v356 = vsub.f32 %v256, %v170
        %v357 = vsub.f32 %v252, %v171
        %v358 = vsub.f32 %v256, %v171
        %v359 = vsub.f32 %v252, %v172
        %v360 = vsub.f32 %v256, %v172
        %v361 = vsub.f32 %v260, %v166
        %v362 = vsub.f32 %v264, %v166
        %v363 = vsub.f32 %v260, %v167
        %v364 = vsub.f32 %v264, %v167
        %v365 = vsub.f32 %v260, %v168
        %v366 = vsub.f32 %v264, %v168
        %v367 = vsub.f32 %v260, %v169
        %v368 = vsub.f32 %v264, %v169
        %v369 = vsub.f32 %v260, %v170
        %v370 = vsub.f32 %v264, %v170
        %v371 = vsub.f32 %v260, %v171
        %v372 = vsub.f32 %v264, %v171
        %v373 = vsub.f32 %v260, %v172
        %v374 = vsub.f32 %v264, %v172
        %v375 = vsub.f32 %v268, %v166
        %v376 = vsub.f32 %v272, %v166
        %v377 = vsub.f32 %v268, %v167
        %v378 = vsub.f32 %v272, %v167
        %v379 = vsub.f32 %v268, %v168
        %v380 = vsub.f32 %v272, %v168
        %v381 = vsub.f32 %v268, %v169
        %v382 = vsub.f32 %v272, %v169
        %v383 = vsub.f32 %v268, %v170
        %v384 = vsub.f32 %v272, %v170
        %v385 = vsub.f32 %v268, %v171
        %v386 = vsub.f32 %v272, %v171
        %v387 = vsub.f32 %v268, %v172
        %v388 = vsub.f32 %v272, %v172
        %v389 = vsub.f32 %v276, %v166
        %v390 = vsub.f32 %v280, %v166
        %v391 = vsub.f32 %v276, %v167
        %v392 = vsub.f32 %v280, %v167
        %v393 = vsub.f32 %v276, %v168
        %v394 = vsub.f32 %v280, %v168
        %v395 = vsub.f32 %v276, %v169
        %v396 = vsub.f32 %v280, %v169
        %v397 = vsub.f32 %v276, %v170
        %v398 = vsub.f32 %v280, %v170
        %v399 = vsub.f32 %v276, %v171
        %v400 = vsub.f32 %v280, %v171
        %v401 = vsub.f32 %v276, %v172
        %v402 = vsub.f32 %v280, %v172
        %v403 = vsub.f32 %v284, %v166
        %v404 = vsub.f32 %v288, %v166
        %v405 = vsub.f32 %v284, %v167
        %v406 = vsub.f32 %v288, %v167
        %v407 = vsub.f32 %v284, %v168
        %v408 = vsub.f32 %v288, %v168
        %v409 = vsub.f32 %v284, %v169
        %v410 = vsub.f32 %v288, %v169
        %v411 = vsub.f32 %v284, %v170
        %v412 = vsub.f32 %v288, %v170
        %v413 = vsub.f32 %v284, %v171
        %v414 = vsub.f32 %v288, %v171
        %v415 = vsub.f32 %v284, %v172
        %v416 = vsub.f32 %v288, %v172
        %v417 = vtanh.pop %v305
        %v418 = vtanh.pop %v306
        %v419 = vtanh.pop %v307
        %v420 = vtanh.pop %v308
        %v421 = vtanh.pop %v309
        %v422 = vtanh.pop %v310
        %v423 = vtanh.pop %v311
        %v424 = vtanh.pop %v312
        %v425 = vtanh.pop %v313
        %v426 = vtanh.pop %v314
        %v427 = vtanh.pop %v315
        %v428 = vtanh.pop %v316
        %v429 = vtanh.pop %v317
        %v430 = vtanh.pop %v318
        %v431 = vtanh.pop %v319
        %v432 = vtanh.pop %v320
        %v433 = vtanh.pop %v321
        %v434 = vtanh.pop %v322
        %v435 = vtanh.pop %v323
        %v436 = vtanh.pop %v324
        %v437 = vtanh.pop %v325
        %v438 = vtanh.pop %v326
        %v439 = vtanh.pop %v327
        %v440 = vtanh.pop %v328
        %v441 = vtanh.pop %v329
        %v442 = vtanh.pop %v330
        %v443 = vtanh.pop %v331
        %v444 = vtanh.pop %v332
        %v445 = vtanh.pop %v333
        %v446 = vtanh.pop %v334
        %v447 = vtanh.pop %v335
        %v448 = vtanh.pop %v336
        %v449 = vtanh.pop %v337
        %v450 = vtanh.pop %v338
        %v451 = vtanh.pop %v339
        %v452 = vtanh.pop %v340
        %v453 = vtanh.pop %v341
        %v454 = vtanh.pop %v342
        %v455 = vtanh.pop %v343
        %v456 = vtanh.pop %v344
        %v457 = vtanh.pop %v345
        %v458 = vtanh.pop %v346
        %v459 = vtanh.pop %v347
        %v460 = vtanh.pop %v348
        %v461 = vtanh.pop %v349
        %v462 = vtanh.pop %v350
        %v463 = vtanh.pop %v351
        %v464 = vtanh.pop %v352
        %v465 = vtanh.pop %v353
        %v466 = vtanh.pop %v354
        %v467 = vtanh.pop %v355
        %v468 = vtanh.pop %v356
        %v469 = vtanh.pop %v357
        %v470 = vtanh.pop %v358
        %v471 = vtanh.pop %v359
        %v472 = vtanh.pop %v360
        %v473 = vtanh.pop %v361
        %v474 = vtanh.pop %v362
        %v475 = vtanh.pop %v363
        %v476 = vtanh.pop %v364
        %v477 = vtanh.pop %v365
        %v478 = vtanh.pop %v366
        %v479 = vtanh.pop %v367
        %v480 = vtanh.pop %v368
        %v481 = vtanh.pop %v369
        %v482 = vtanh.pop %v370
        %v483 = vtanh.pop %v371
        %v484 = vtanh.pop %v372
        %v485 = vtanh.pop %v373
        %v486 = vtanh.pop %v374
        %v487 = vtanh.pop %v375
        %v488 = vtanh.pop %v376
        %v489 = vtanh.pop %v377
        %v490 = vtanh.pop %v378
        %v491 = vtanh.pop %v379
        %v492 = vtanh.pop %v380
        %v493 = vtanh.pop %v381
        %v494 = vtanh.pop %v382
        %v495 = vtanh.pop %v383
        %v496 = vtanh.pop %v384
        %v497 = vtanh.pop %v385
        %v498 = vtanh.pop %v386
        %v499 = vtanh.pop %v387
        %v500 = vtanh.pop %v388
        %v501 = vtanh.pop %v389
        %v502 = vtanh.pop %v390
        %v503 = vtanh.pop %v391
        %v504 = vtanh.pop %v392
        %v505 = vtanh.pop %v393
        %v506 = vtanh.pop %v394
        %v507 = vtanh.pop %v395
        %v508 = vtanh.pop %v396
        %v509 = vtanh.pop %v397
        %v510 = vtanh.pop %v398
        %v511 = vtanh.pop %v399
        %v512 = vtanh.pop %v400
        %v513 = vtanh.pop %v401
        %v514 = vtanh.pop %v402
        %v515 = vtanh.pop %v403
        %v516 = vtanh.pop %v404
        %v517 = vtanh.pop %v405
        %v518 = vtanh.pop %v406
        %v519 = vtanh.pop %v407
        %v520 = vtanh.pop %v408
        %v521 = vtanh.pop %v409
        %v522 = vtanh.pop %v410
        %v523 = vtanh.pop %v411
        %v524 = vtanh.pop %v412
        %v525 = vtanh.pop %v413
        %v526 = vtanh.pop %v414
        %v527 = vtanh.pop %v415
        %v528 = vtanh.pop %v416
        %v529 = vadd.f32 %v417, %v418
        %530 = vadd.xlane.f32.xlu0 %v529
        %v531 = vpop.xlane.xlu0 %530
        %v532 = vadd.f32 %v419, %v420
        %533 = vadd.xlane.f32.xlu0 %v532
        %v534 = vpop.xlane.xlu0 %533
        %v535 = vadd.f32 %v421, %v422
        %536 = vadd.xlane.f32.xlu0 %v535
        %v537 = vpop.xlane.xlu0 %536
        %v538 = vadd.f32 %v423, %v424
        %539 = vadd.xlane.f32.xlu0 %v538
        %v540 = vpop.xlane.xlu0 %539
        %v541 = vadd.f32 %v425, %v426
        %542 = vadd.xlane.f32.xlu0 %v541
        %v543 = vpop.xlane.xlu0 %542
        %v544 = vadd.f32 %v427, %v428
        %545 = vadd.xlane.f32.xlu0 %v544
        %v546 = vpop.xlane.xlu0 %545
        %vm547 = vcmask 1042432
        %v548 = vsel %vm547, %v429, 0.0
        %v549 = vsel %vm547, %v430, 0.0
        %v550 = vadd.f32 %v548, %v549
        %551 = vadd.xlane.f32.xlu0 %v550
        %v552 = vpop.xlane.xlu0 %551
        %v553 = vadd.f32 %v431, %v432
        %554 = vadd.xlane.f32.xlu0 %v553
        %v555 = vpop.xlane.xlu0 %554
        %v556 = vadd.f32 %v433, %v434
        %557 = vadd.xlane.f32.xlu0 %v556
        %v558 = vpop.xlane.xlu0 %557
        %v559 = vadd.f32 %v435, %v436
        %560 = vadd.xlane.f32.xlu0 %v559
        %v561 = vpop.xlane.xlu0 %560
        %v562 = vadd.f32 %v437, %v438
        %563 = vadd.xlane.f32.xlu0 %v562
        %v564 = vpop.xlane.xlu0 %563
        %v565 = vadd.f32 %v439, %v440
        %566 = vadd.xlane.f32.xlu0 %v565
        %v567 = vpop.xlane.xlu0 %566
        %v568 = vadd.f32 %v441, %v442
        %569 = vadd.xlane.f32.xlu0 %v568
        %v570 = vpop.xlane.xlu0 %569
        %v571 = vsel %vm547, %v443, 0.0
        %v572 = vsel %vm547, %v444, 0.0
        %v573 = vadd.f32 %v571, %v572
        %574 = vadd.xlane.f32.xlu0 %v573
        %v575 = vpop.xlane.xlu0 %574
        %v576 = vadd.f32 %v445, %v446
        %577 = vadd.xlane.f32.xlu0 %v576
        %v578 = vpop.xlane.xlu0 %577
        %v579 = vadd.f32 %v447, %v448
        %580 = vadd.xlane.f32.xlu0 %v579
        %v581 = vpop.xlane.xlu0 %580
        %v582 = vadd.f32 %v449, %v450
        %583 = vadd.xlane.f32.xlu0 %v582
        %v584 = vpop.xlane.xlu0 %583
        %v585 = vadd.f32 %v451, %v452
        %586 = vadd.xlane.f32.xlu0 %v585
        %v587 = vpop.xlane.xlu0 %586
        %v588 = vadd.f32 %v453, %v454
        %589 = vadd.xlane.f32.xlu0 %v588
        %v590 = vpop.xlane.xlu0 %589
        %v591 = vadd.f32 %v455, %v456
        %592 = vadd.xlane.f32.xlu0 %v591
        %v593 = vpop.xlane.xlu0 %592
        %v594 = vsel %vm547, %v457, 0.0
        %v595 = vsel %vm547, %v458, 0.0
        %v596 = vadd.f32 %v594, %v595
        %597 = vadd.xlane.f32.xlu0 %v596
        %v598 = vpop.xlane.xlu0 %597
        %v599 = vadd.f32 %v459, %v460
        %600 = vadd.xlane.f32.xlu0 %v599
        %v601 = vpop.xlane.xlu0 %600
        %v602 = vadd.f32 %v461, %v462
        %603 = vadd.xlane.f32.xlu0 %v602
        %v604 = vpop.xlane.xlu0 %603
        %v605 = vadd.f32 %v463, %v464
        %606 = vadd.xlane.f32.xlu0 %v605
        %v607 = vpop.xlane.xlu0 %606
        %v608 = vadd.f32 %v465, %v466
        %609 = vadd.xlane.f32.xlu0 %v608
        %v610 = vpop.xlane.xlu0 %609
        %v611 = vadd.f32 %v467, %v468
        %612 = vadd.xlane.f32.xlu0 %v611
        %v613 = vpop.xlane.xlu0 %612
        %v614 = vadd.f32 %v469, %v470
        %615 = vadd.xlane.f32.xlu0 %v614
        %v616 = vpop.xlane.xlu0 %615
        %v617 = vsel %vm547, %v471, 0.0
        %v618 = vsel %vm547, %v472, 0.0
        %v619 = vadd.f32 %v617, %v618
        %620 = vadd.xlane.f32.xlu0 %v619
        %v621 = vpop.xlane.xlu0 %620
        %v622 = vadd.f32 %v473, %v474
        %623 = vadd.xlane.f32.xlu0 %v622
        %v624 = vpop.xlane.xlu0 %623
        %v625 = vadd.f32 %v475, %v476
        %626 = vadd.xlane.f32.xlu0 %v625
        %v627 = vpop.xlane.xlu0 %626
        %v628 = vadd.f32 %v477, %v478
        %629 = vadd.xlane.f32.xlu0 %v628
        %v630 = vpop.xlane.xlu0 %629
        %v631 = vadd.f32 %v479, %v480
        %632 = vadd.xlane.f32.xlu0 %v631
        %v633 = vpop.xlane.xlu0 %632
        %v634 = vadd.f32 %v481, %v482
        %635 = vadd.xlane.f32.xlu0 %v634
        %v636 = vpop.xlane.xlu0 %635
        %v637 = vadd.f32 %v483, %v484
        %638 = vadd.xlane.f32.xlu0 %v637
        %v639 = vpop.xlane.xlu0 %638
        %v640 = vsel %vm547, %v485, 0.0
        %v641 = vsel %vm547, %v486, 0.0
        %v642 = vadd.f32 %v640, %v641
        %643 = vadd.xlane.f32.xlu0 %v642
        %v644 = vpop.xlane.xlu0 %643
        %v645 = vadd.f32 %v487, %v488
        %646 = vadd.xlane.f32.xlu0 %v645
        %v647 = vpop.xlane.xlu0 %646
        %v648 = vadd.f32 %v489, %v490
        %649 = vadd.xlane.f32.xlu0 %v648
        %v650 = vpop.xlane.xlu0 %649
        %v651 = vadd.f32 %v491, %v492
        %652 = vadd.xlane.f32.xlu0 %v651
        %v653 = vpop.xlane.xlu0 %652
        %v654 = vadd.f32 %v493, %v494
        %655 = vadd.xlane.f32.xlu0 %v654
        %v656 = vpop.xlane.xlu0 %655
        %v657 = vadd.f32 %v495, %v496
        %658 = vadd.xlane.f32.xlu0 %v657
        %v659 = vpop.xlane.xlu0 %658
        %v660 = vadd.f32 %v497, %v498
        %661 = vadd.xlane.f32.xlu0 %v660
        %v662 = vpop.xlane.xlu0 %661
        %v663 = vsel %vm547, %v499, 0.0
        %v664 = vsel %vm547, %v500, 0.0
        %v665 = vadd.f32 %v663, %v664
        %666 = vadd.xlane.f32.xlu0 %v665
        %v667 = vpop.xlane.xlu0 %666
        %v668 = vadd.f32 %v501, %v502
        %669 = vadd.xlane.f32.xlu0 %v668
        %v670 = vpop.xlane.xlu0 %669
        %v671 = vadd.f32 %v503, %v504
        %672 = vadd.xlane.f32.xlu0 %v671
        %v673 = vpop.xlane.xlu0 %672
        %v674 = vadd.f32 %v505, %v506
        %675 = vadd.xlane.f32.xlu0 %v674
        %v676 = vpop.xlane.xlu0 %675
        %v677 = vadd.f32 %v507, %v508
        %678 = vadd.xlane.f32.xlu0 %v677
        %v679 = vpop.xlane.xlu0 %678
        %v680 = vadd.f32 %v509, %v510
        %681 = vadd.xlane.f32.xlu0 %v680
        %v682 = vpop.xlane.xlu0 %681
        %v683 = vadd.f32 %v511, %v512
        %684 = vadd.xlane.f32.xlu0 %v683
        %v685 = vpop.xlane.xlu0 %684
        %v686 = vsel %vm547, %v513, 0.0
        %v687 = vsel %vm547, %v514, 0.0
        %v688 = vadd.f32 %v686, %v687
        %689 = vadd.xlane.f32.xlu0 %v688
        %v690 = vpop.xlane.xlu0 %689
        %v691 = vadd.f32 %v515, %v516
        %692 = vadd.xlane.f32.xlu0 %v691
        %v693 = vpop.xlane.xlu0 %692
        %v694 = vadd.f32 %v517, %v518
        %695 = vadd.xlane.f32.xlu0 %v694
        %v696 = vpop.xlane.xlu0 %695
        %v697 = vadd.f32 %v519, %v520
        %698 = vadd.xlane.f32.xlu0 %v697
        %v699 = vpop.xlane.xlu0 %698
        %v700 = vadd.f32 %v521, %v522
        %701 = vadd.xlane.f32.xlu0 %v700
        %v702 = vpop.xlane.xlu0 %701
        %v703 = vadd.f32 %v523, %v524
        %704 = vadd.xlane.f32.xlu0 %v703
        %v705 = vpop.xlane.xlu0 %704
        %v706 = vadd.f32 %v525, %v526
        %707 = vadd.xlane.f32.xlu0 %v706
        %v708 = vpop.xlane.xlu0 %707
        %v709 = vsel %vm547, %v527, 0.0
        %v710 = vsel %vm547, %v528, 0.0
        %v711 = vadd.f32 %v709, %v710
        %712 = vadd.xlane.f32.xlu0 %v711
        %v713 = vpop.xlane.xlu0 %712
        %vm770 = vcmask 1046528
        %v771 = vrot.slane %v531, 1
        %v772 = vrot.slane %v534, 1
        %v773 = vsel %vm770, %v771, %v772
        %v774 = vrot.slane %v537, 1
        %v775 = vsel %vm770, %v772, %v774
        %v776 = vrot.slane %v540, 1
        %v777 = vsel %vm770, %v774, %v776
        %v778 = vrot.slane %v543, 1
        %v779 = vsel %vm770, %v776, %v778
        %v780 = vrot.slane %v546, 1
        %v781 = vsel %vm770, %v778, %v780
        %v782 = vrot.slane %v552, 1
        %v783 = vsel %vm770, %v780, %v782
        %v784 = vrot.slane %v555, 1
        %v785 = vrot.slane %v558, 1
        %v786 = vsel %vm770, %v784, %v785
        %v787 = vrot.slane %v561, 1
        %v788 = vsel %vm770, %v785, %v787
        %v789 = vrot.slane %v564, 1
        %v790 = vsel %vm770, %v787, %v789
        %v791 = vrot.slane %v567, 1
        %v792 = vsel %vm770, %v789, %v791
        %v793 = vrot.slane %v570, 1
        %v794 = vsel %vm770, %v791, %v793
        %v795 = vrot.slane %v575, 1
        %v796 = vsel %vm770, %v793, %v795
        %v797 = vrot.slane %v578, 1
        %v798 = vrot.slane %v581, 1
        %v799 = vsel %vm770, %v797, %v798
        %v800 = vrot.slane %v584, 1
        %v801 = vsel %vm770, %v798, %v800
        %v802 = vrot.slane %v587, 1
        %v803 = vsel %vm770, %v800, %v802
        %v804 = vrot.slane %v590, 1
        %v805 = vsel %vm770, %v802, %v804
        %v806 = vrot.slane %v593, 1
        %v807 = vsel %vm770, %v804, %v806
        %v808 = vrot.slane %v598, 1
        %v809 = vsel %vm770, %v806, %v808
        %v810 = vrot.slane %v601, 1
        %v811 = vrot.slane %v604, 1
        %v812 = vsel %vm770, %v810, %v811
        %v813 = vrot.slane %v607, 1
        %v814 = vsel %vm770, %v811, %v813
        %v815 = vrot.slane %v610, 1
        %v816 = vsel %vm770, %v813, %v815
        %v817 = vrot.slane %v613, 1
        %v818 = vsel %vm770, %v815, %v817
        %v819 = vrot.slane %v616, 1
        %v820 = vsel %vm770, %v817, %v819
        %v821 = vrot.slane %v621, 1
        %v822 = vsel %vm770, %v819, %v821
        %v823 = vrot.slane %v624, 1
        %v824 = vrot.slane %v627, 1
        %v825 = vsel %vm770, %v823, %v824
        %v826 = vrot.slane %v630, 1
        %v827 = vsel %vm770, %v824, %v826
        %v828 = vrot.slane %v633, 1
        %v829 = vsel %vm770, %v826, %v828
        %v830 = vrot.slane %v636, 1
        %v831 = vsel %vm770, %v828, %v830
        %v832 = vrot.slane %v639, 1
        %v833 = vsel %vm770, %v830, %v832
        %v834 = vrot.slane %v644, 1
        %v835 = vsel %vm770, %v832, %v834
        %v836 = vrot.slane %v647, 1
        %v837 = vrot.slane %v650, 1
        %v838 = vsel %vm770, %v836, %v837
        %v839 = vrot.slane %v653, 1
        %v840 = vsel %vm770, %v837, %v839
        %v841 = vrot.slane %v656, 1
        %v842 = vsel %vm770, %v839, %v841
        %v843 = vrot.slane %v659, 1
        %v844 = vsel %vm770, %v841, %v843
        %v845 = vrot.slane %v662, 1
        %v846 = vsel %vm770, %v843, %v845
        %v847 = vrot.slane %v667, 1
        %v848 = vsel %vm770, %v845, %v847
        %v849 = vrot.slane %v670, 1
        %v850 = vrot.slane %v673, 1
        %v851 = vsel %vm770, %v849, %v850
        %v852 = vrot.slane %v676, 1
        %v853 = vsel %vm770, %v850, %v852
        %v854 = vrot.slane %v679, 1
        %v855 = vsel %vm770, %v852, %v854
        %v856 = vrot.slane %v682, 1
        %v857 = vsel %vm770, %v854, %v856
        %v858 = vrot.slane %v685, 1
        %v859 = vsel %vm770, %v856, %v858
        %v860 = vrot.slane %v690, 1
        %v861 = vsel %vm770, %v858, %v860
        %v862 = vrot.slane %v693, 1
        %v863 = vrot.slane %v696, 1
        %v864 = vsel %vm770, %v862, %v863
        %v865 = vrot.slane %v699, 1
        %v866 = vsel %vm770, %v863, %v865
        %v867 = vrot.slane %v702, 1
        %v868 = vsel %vm770, %v865, %v867
        %v869 = vrot.slane %v705, 1
        %v870 = vsel %vm770, %v867, %v869
        %v871 = vrot.slane %v708, 1
        %v872 = vsel %vm770, %v869, %v871
        %v873 = vrot.slane %v713, 1
        %v874 = vsel %vm770, %v871, %v873
        %v931 = vsub.f32 %v531, %v773
        %v932 = vsub.f32 %v534, %v775
        %v933 = vsub.f32 %v537, %v777
        %v934 = vsub.f32 %v540, %v779
        %v935 = vsub.f32 %v543, %v781
        %v936 = vsub.f32 %v546, %v783
        %v937 = vsub.f32 %v552, %v782
        %v938 = vsub.f32 %v555, %v786
        %v939 = vsub.f32 %v558, %v788
        %v940 = vsub.f32 %v561, %v790
        %v941 = vsub.f32 %v564, %v792
        %v942 = vsub.f32 %v567, %v794
        %v943 = vsub.f32 %v570, %v796
        %v944 = vsub.f32 %v575, %v795
        %v945 = vsub.f32 %v578, %v799
        %v946 = vsub.f32 %v581, %v801
        %v947 = vsub.f32 %v584, %v803
        %v948 = vsub.f32 %v587, %v805
        %v949 = vsub.f32 %v590, %v807
        %v950 = vsub.f32 %v593, %v809
        %v951 = vsub.f32 %v598, %v808
        %v952 = vsub.f32 %v601, %v812
        %v953 = vsub.f32 %v604, %v814
        %v954 = vsub.f32 %v607, %v816
        %v955 = vsub.f32 %v610, %v818
        %v956 = vsub.f32 %v613, %v820
        %v957 = vsub.f32 %v616, %v822
        %v958 = vsub.f32 %v621, %v821
        %v959 = vsub.f32 %v624, %v825
        %v960 = vsub.f32 %v627, %v827
        %v961 = vsub.f32 %v630, %v829
        %v962 = vsub.f32 %v633, %v831
        %v963 = vsub.f32 %v636, %v833
        %v964 = vsub.f32 %v639, %v835
        %v965 = vsub.f32 %v644, %v834
        %v966 = vsub.f32 %v647, %v838
        %v967 = vsub.f32 %v650, %v840
        %v968 = vsub.f32 %v653, %v842
        %v969 = vsub.f32 %v656, %v844
        %v970 = vsub.f32 %v659, %v846
        %v971 = vsub.f32 %v662, %v848
        %v972 = vsub.f32 %v667, %v847
        %v973 = vsub.f32 %v670, %v851
        %v974 = vsub.f32 %v673, %v853
        %v975 = vsub.f32 %v676, %v855
        %v976 = vsub.f32 %v679, %v857
        %v977 = vsub.f32 %v682, %v859
        %v978 = vsub.f32 %v685, %v861
        %v979 = vsub.f32 %v690, %v860
        %v980 = vsub.f32 %v693, %v864
        %v981 = vsub.f32 %v696, %v866
        %v982 = vsub.f32 %v699, %v868
        %v983 = vsub.f32 %v702, %v870
        %v984 = vsub.f32 %v705, %v872
        %v985 = vsub.f32 %v708, %v874
        %v986 = vsub.f32 %v713, %v873
        %v987 = vmul.f32 %v931, 0.5
        %v988 = vmul.f32 %v932, 0.5
        %v989 = vmul.f32 %v933, 0.5
        %v990 = vmul.f32 %v934, 0.5
        %v991 = vmul.f32 %v935, 0.5
        %v992 = vmul.f32 %v936, 0.5
        %v993 = vmul.f32 %v937, 0.5
        %v994 = vmul.f32 %v938, 0.5
        %v995 = vmul.f32 %v939, 0.5
        %v996 = vmul.f32 %v940, 0.5
        %v997 = vmul.f32 %v941, 0.5
        %v998 = vmul.f32 %v942, 0.5
        %v999 = vmul.f32 %v943, 0.5
        %v1000 = vmul.f32 %v944, 0.5
        %v1001 = vmul.f32 %v945, 0.5
        %v1002 = vmul.f32 %v946, 0.5
        %v1003 = vmul.f32 %v947, 0.5
        %v1004 = vmul.f32 %v948, 0.5
        %v1005 = vmul.f32 %v949, 0.5
        %v1006 = vmul.f32 %v950, 0.5
        %v1007 = vmul.f32 %v951, 0.5
        %v1008 = vmul.f32 %v952, 0.5
        %v1009 = vmul.f32 %v953, 0.5
        %v1010 = vmul.f32 %v954, 0.5
        %v1011 = vmul.f32 %v955, 0.5
        %v1012 = vmul.f32 %v956, 0.5
        %v1013 = vmul.f32 %v957, 0.5
        %v1014 = vmul.f32 %v958, 0.5
        %v1015 = vmul.f32 %v959, 0.5
        %v1016 = vmul.f32 %v960, 0.5
        %v1017 = vmul.f32 %v961, 0.5
        %v1018 = vmul.f32 %v962, 0.5
        %v1019 = vmul.f32 %v963, 0.5
        %v1020 = vmul.f32 %v964, 0.5
        %v1021 = vmul.f32 %v965, 0.5
        %v1022 = vmul.f32 %v966, 0.5
        %v1023 = vmul.f32 %v967, 0.5
        %v1024 = vmul.f32 %v968, 0.5
        %v1025 = vmul.f32 %v969, 0.5
        %v1026 = vmul.f32 %v970, 0.5
        %v1027 = vmul.f32 %v971, 0.5
        %v1028 = vmul.f32 %v972, 0.5
        %v1029 = vmul.f32 %v973, 0.5
        %v1030 = vmul.f32 %v974, 0.5
        %v1031 = vmul.f32 %v975, 0.5
        %v1032 = vmul.f32 %v976, 0.5
        %v1033 = vmul.f32 %v977, 0.5
        %v1034 = vmul.f32 %v978, 0.5
        %v1035 = vmul.f32 %v979, 0.5
        %v1036 = vmul.f32 %v980, 0.5
        %v1037 = vmul.f32 %v981, 0.5
        %v1038 = vmul.f32 %v982, 0.5
        %v1039 = vmul.f32 %v983, 0.5
        %v1040 = vmul.f32 %v984, 0.5
        %v1041 = vmul.f32 %v985, 0.5
        %v1042 = vmul.f32 %v986, 0.5
        %1099 = vset.pattern.permute.xlu0 0
        %1100 = vperm.xlu0 %1099, %v987
        %v1101 = vpop.permute.xlu0 %1100
        %1102 = vset.pattern.permute.xlu0 0
        %1103 = vperm.xlu0 %1102, %v988
        %v1104 = vpop.permute.xlu0 %1103
        %1105 = vset.pattern.permute.xlu0 0
        %1106 = vperm.xlu0 %1105, %v989
        %v1107 = vpop.permute.xlu0 %1106
        %1108 = vset.pattern.permute.xlu0 0
        %1109 = vperm.xlu0 %1108, %v990
        %v1110 = vpop.permute.xlu0 %1109
        %1111 = vset.pattern.permute.xlu0 0
        %1112 = vperm.xlu0 %1111, %v991
        %v1113 = vpop.permute.xlu0 %1112
        %1114 = vset.pattern.permute.xlu0 0
        %1115 = vperm.xlu0 %1114, %v992
        %v1116 = vpop.permute.xlu0 %1115
        %1117 = vset.pattern.permute.xlu0 0
        %1118 = vperm.xlu0 %1117, %v993
        %v1119 = vpop.permute.xlu0 %1118
        %1120 = vset.pattern.permute.xlu0 0
        %1121 = vperm.xlu0 %1120, %v994
        %v1122 = vpop.permute.xlu0 %1121
        %1123 = vset.pattern.permute.xlu0 0
        %1124 = vperm.xlu0 %1123, %v995
        %v1125 = vpop.permute.xlu0 %1124
        %1126 = vset.pattern.permute.xlu0 0
        %1127 = vperm.xlu0 %1126, %v996
        %v1128 = vpop.permute.xlu0 %1127
        %1129 = vset.pattern.permute.xlu0 0
        %1130 = vperm.xlu0 %1129, %v997
        %v1131 = vpop.permute.xlu0 %1130
        %1132 = vset.pattern.permute.xlu0 0
        %1133 = vperm.xlu0 %1132, %v998
        %v1134 = vpop.permute.xlu0 %1133
        %1135 = vset.pattern.permute.xlu0 0
        %1136 = vperm.xlu0 %1135, %v999
        %v1137 = vpop.permute.xlu0 %1136
        %1138 = vset.pattern.permute.xlu0 0
        %1139 = vperm.xlu0 %1138, %v1000
        %v1140 = vpop.permute.xlu0 %1139
        %1141 = vset.pattern.permute.xlu0 0
        %1142 = vperm.xlu0 %1141, %v1001
        %v1143 = vpop.permute.xlu0 %1142
        %1144 = vset.pattern.permute.xlu0 0
        %1145 = vperm.xlu0 %1144, %v1002
        %v1146 = vpop.permute.xlu0 %1145
        %1147 = vset.pattern.permute.xlu0 0
        %1148 = vperm.xlu0 %1147, %v1003
        %v1149 = vpop.permute.xlu0 %1148
        %1150 = vset.pattern.permute.xlu0 0
        %1151 = vperm.xlu0 %1150, %v1004
        %v1152 = vpop.permute.xlu0 %1151
        %1153 = vset.pattern.permute.xlu0 0
        %1154 = vperm.xlu0 %1153, %v1005
        %v1155 = vpop.permute.xlu0 %1154
        %1156 = vset.pattern.permute.xlu0 0
        %1157 = vperm.xlu0 %1156, %v1006
        %v1158 = vpop.permute.xlu0 %1157
        %1159 = vset.pattern.permute.xlu0 0
        %1160 = vperm.xlu0 %1159, %v1007
        %v1161 = vpop.permute.xlu0 %1160
        %1162 = vset.pattern.permute.xlu0 0
        %1163 = vperm.xlu0 %1162, %v1008
        %v1164 = vpop.permute.xlu0 %1163
        %1165 = vset.pattern.permute.xlu0 0
        %1166 = vperm.xlu0 %1165, %v1009
        %v1167 = vpop.permute.xlu0 %1166
        %1168 = vset.pattern.permute.xlu0 0
        %1169 = vperm.xlu0 %1168, %v1010
        %v1170 = vpop.permute.xlu0 %1169
        %1171 = vset.pattern.permute.xlu0 0
        %1172 = vperm.xlu0 %1171, %v1011
        %v1173 = vpop.permute.xlu0 %1172
        %1174 = vset.pattern.permute.xlu0 0
        %1175 = vperm.xlu0 %1174, %v1012
        %v1176 = vpop.permute.xlu0 %1175
        %1177 = vset.pattern.permute.xlu0 0
        %1178 = vperm.xlu0 %1177, %v1013
        %v1179 = vpop.permute.xlu0 %1178
        %1180 = vset.pattern.permute.xlu0 0
        %1181 = vperm.xlu0 %1180, %v1014
        %v1182 = vpop.permute.xlu0 %1181
        %1183 = vset.pattern.permute.xlu0 0
        %1184 = vperm.xlu0 %1183, %v1015
        %v1185 = vpop.permute.xlu0 %1184
        %1186 = vset.pattern.permute.xlu0 0
        %1187 = vperm.xlu0 %1186, %v1016
        %v1188 = vpop.permute.xlu0 %1187
        %1189 = vset.pattern.permute.xlu0 0
        %1190 = vperm.xlu0 %1189, %v1017
        %v1191 = vpop.permute.xlu0 %1190
        %1192 = vset.pattern.permute.xlu0 0
        %1193 = vperm.xlu0 %1192, %v1018
        %v1194 = vpop.permute.xlu0 %1193
        %1195 = vset.pattern.permute.xlu0 0
        %1196 = vperm.xlu0 %1195, %v1019
        %v1197 = vpop.permute.xlu0 %1196
        %1198 = vset.pattern.permute.xlu0 0
        %1199 = vperm.xlu0 %1198, %v1020
        %v1200 = vpop.permute.xlu0 %1199
        %1201 = vset.pattern.permute.xlu0 0
        %1202 = vperm.xlu0 %1201, %v1021
        %v1203 = vpop.permute.xlu0 %1202
        %1204 = vset.pattern.permute.xlu0 0
        %1205 = vperm.xlu0 %1204, %v1022
        %v1206 = vpop.permute.xlu0 %1205
        %1207 = vset.pattern.permute.xlu0 0
        %1208 = vperm.xlu0 %1207, %v1023
        %v1209 = vpop.permute.xlu0 %1208
        %1210 = vset.pattern.permute.xlu0 0
        %1211 = vperm.xlu0 %1210, %v1024
        %v1212 = vpop.permute.xlu0 %1211
        %1213 = vset.pattern.permute.xlu0 0
        %1214 = vperm.xlu0 %1213, %v1025
        %v1215 = vpop.permute.xlu0 %1214
        %1216 = vset.pattern.permute.xlu0 0
        %1217 = vperm.xlu0 %1216, %v1026
        %v1218 = vpop.permute.xlu0 %1217
        %1219 = vset.pattern.permute.xlu0 0
        %1220 = vperm.xlu0 %1219, %v1027
        %v1221 = vpop.permute.xlu0 %1220
        %1222 = vset.pattern.permute.xlu0 0
        %1223 = vperm.xlu0 %1222, %v1028
        %v1224 = vpop.permute.xlu0 %1223
        %1225 = vset.pattern.permute.xlu0 0
        %1226 = vperm.xlu0 %1225, %v1029
        %v1227 = vpop.permute.xlu0 %1226
        %1228 = vset.pattern.permute.xlu0 0
        %1229 = vperm.xlu0 %1228, %v1030
        %v1230 = vpop.permute.xlu0 %1229
        %1231 = vset.pattern.permute.xlu0 0
        %1232 = vperm.xlu0 %1231, %v1031
        %v1233 = vpop.permute.xlu0 %1232
        %1234 = vset.pattern.permute.xlu0 0
        %1235 = vperm.xlu0 %1234, %v1032
        %v1236 = vpop.permute.xlu0 %1235
        %1237 = vset.pattern.permute.xlu0 0
        %1238 = vperm.xlu0 %1237, %v1033
        %v1239 = vpop.permute.xlu0 %1238
        %1240 = vset.pattern.permute.xlu0 0
        %1241 = vperm.xlu0 %1240, %v1034
        %v1242 = vpop.permute.xlu0 %1241
        %1243 = vset.pattern.permute.xlu0 0
        %1244 = vperm.xlu0 %1243, %v1035
        %v1245 = vpop.permute.xlu0 %1244
        %1246 = vset.pattern.permute.xlu0 0
        %1247 = vperm.xlu0 %1246, %v1036
        %v1248 = vpop.permute.xlu0 %1247
        %1249 = vset.pattern.permute.xlu0 0
        %1250 = vperm.xlu0 %1249, %v1037
        %v1251 = vpop.permute.xlu0 %1250
        %1252 = vset.pattern.permute.xlu0 0
        %1253 = vperm.xlu0 %1252, %v1038
        %v1254 = vpop.permute.xlu0 %1253
        %1255 = vset.pattern.permute.xlu0 0
        %1256 = vperm.xlu0 %1255, %v1039
        %v1257 = vpop.permute.xlu0 %1256
        %1258 = vset.pattern.permute.xlu0 0
        %1259 = vperm.xlu0 %1258, %v1040
        %v1260 = vpop.permute.xlu0 %1259
        %1261 = vset.pattern.permute.xlu0 0
        %1262 = vperm.xlu0 %1261, %v1041
        %v1263 = vpop.permute.xlu0 %1262
        %1264 = vset.pattern.permute.xlu0 0
        %1265 = vperm.xlu0 %1264, %v1042
        %v1266 = vpop.permute.xlu0 %1265
        %v1267 = vlaneseq
        %v1268 = vand.u32 %v1267, 127
        %v1269 = vlaneseq
        %v1270 = vshrl.u32 %v1269, 7
        %v1271 = vsub.s32 %v1268, %v1270
        %v1272 = vrot.slane %v1101, %v1271
        %v1273 = vadd.s32 %v1268, 4294967288
        %v1274 = vlaneseq
        %v1275 = vshrl.u32 %v1274, 7
        %v1276 = vsub.s32 %v1273, %v1275
        %v1277 = vrot.slane %v1104, %v1276
        %vm1278 = vcmask 130112
        %v1279 = vsel %vm1278, %v1277, %v1272
        %v1280 = vadd.s32 %v1268, 4294967280
        %v1281 = vlaneseq
        %v1282 = vshrl.u32 %v1281, 7
        %v1283 = vsub.s32 %v1280, %v1282
        %v1284 = vrot.slane %v1107, %v1283
        %vm1285 = vcmask 195712
        %v1286 = vsel %vm1285, %v1284, %v1279
        %v1287 = vadd.s32 %v1268, 4294967272
        %v1288 = vlaneseq
        %v1289 = vshrl.u32 %v1288, 7
        %v1290 = vsub.s32 %v1287, %v1289
        %v1291 = vrot.slane %v1110, %v1290
        %vm1292 = vcmask 261312
        %v1293 = vsel %vm1292, %v1291, %v1286
        %v1294 = vadd.s32 %v1268, 4294967264
        %v1295 = vlaneseq
        %v1296 = vshrl.u32 %v1295, 7
        %v1297 = vsub.s32 %v1294, %v1296
        %v1298 = vrot.slane %v1113, %v1297
        %vm1299 = vcmask 326912
        %v1300 = vsel %vm1299, %v1298, %v1293
        %v1301 = vadd.s32 %v1268, 4294967256
        %v1302 = vlaneseq
        %v1303 = vshrl.u32 %v1302, 7
        %v1304 = vsub.s32 %v1301, %v1303
        %v1305 = vrot.slane %v1116, %v1304
        %vm1306 = vcmask 392512
        %v1307 = vsel %vm1306, %v1305, %v1300
        %v1308 = vadd.s32 %v1268, 4294967248
        %v1309 = vlaneseq
        %v1310 = vshrl.u32 %v1309, 7
        %v1311 = vsub.s32 %v1308, %v1310
        %v1312 = vrot.slane %v1119, %v1311
        %vm1313 = vcmask 458112
        %v1314 = vsel %vm1313, %v1312, %v1307
        %v1315 = vlaneseq
        %v1316 = vshrl.u32 %v1315, 7
        %v1317 = vsub.s32 %v1268, %v1316
        %v1318 = vrot.slane %v1122, %v1317
        %v1319 = vlaneseq
        %v1320 = vshrl.u32 %v1319, 7
        %v1321 = vsub.s32 %v1273, %v1320
        %v1322 = vrot.slane %v1125, %v1321
        %v1323 = vsel %vm1278, %v1322, %v1318
        %v1324 = vlaneseq
        %v1325 = vshrl.u32 %v1324, 7
        %v1326 = vsub.s32 %v1280, %v1325
        %v1327 = vrot.slane %v1128, %v1326
        %v1328 = vsel %vm1285, %v1327, %v1323
        %v1329 = vlaneseq
        %v1330 = vshrl.u32 %v1329, 7
        %v1331 = vsub.s32 %v1287, %v1330
        %v1332 = vrot.slane %v1131, %v1331
        %v1333 = vsel %vm1292, %v1332, %v1328
        %v1334 = vlaneseq
        %v1335 = vshrl.u32 %v1334, 7
        %v1336 = vsub.s32 %v1294, %v1335
        %v1337 = vrot.slane %v1134, %v1336
        %v1338 = vsel %vm1299, %v1337, %v1333
        %v1339 = vlaneseq
        %v1340 = vshrl.u32 %v1339, 7
        %v1341 = vsub.s32 %v1301, %v1340
        %v1342 = vrot.slane %v1137, %v1341
        %v1343 = vsel %vm1306, %v1342, %v1338
        %v1344 = vlaneseq
        %v1345 = vshrl.u32 %v1344, 7
        %v1346 = vsub.s32 %v1308, %v1345
        %v1347 = vrot.slane %v1140, %v1346
        %v1348 = vsel %vm1313, %v1347, %v1343
        %v1349 = vlaneseq
        %v1350 = vshrl.u32 %v1349, 7
        %v1351 = vsub.s32 %v1268, %v1350
        %v1352 = vrot.slane %v1143, %v1351
        %v1353 = vlaneseq
        %v1354 = vshrl.u32 %v1353, 7
        %v1355 = vsub.s32 %v1273, %v1354
        %v1356 = vrot.slane %v1146, %v1355
        %v1357 = vsel %vm1278, %v1356, %v1352
        %v1358 = vlaneseq
        %v1359 = vshrl.u32 %v1358, 7
        %v1360 = vsub.s32 %v1280, %v1359
        %v1361 = vrot.slane %v1149, %v1360
        %v1362 = vsel %vm1285, %v1361, %v1357
        %v1363 = vlaneseq
        %v1364 = vshrl.u32 %v1363, 7
        %v1365 = vsub.s32 %v1287, %v1364
        %v1366 = vrot.slane %v1152, %v1365
        %v1367 = vsel %vm1292, %v1366, %v1362
        %v1368 = vlaneseq
        %v1369 = vshrl.u32 %v1368, 7
        %v1370 = vsub.s32 %v1294, %v1369
        %v1371 = vrot.slane %v1155, %v1370
        %v1372 = vsel %vm1299, %v1371, %v1367
        %v1373 = vlaneseq
        %v1374 = vshrl.u32 %v1373, 7
        %v1375 = vsub.s32 %v1301, %v1374
        %v1376 = vrot.slane %v1158, %v1375
        %v1377 = vsel %vm1306, %v1376, %v1372
        %v1378 = vlaneseq
        %v1379 = vshrl.u32 %v1378, 7
        %v1380 = vsub.s32 %v1308, %v1379
        %v1381 = vrot.slane %v1161, %v1380
        %v1382 = vsel %vm1313, %v1381, %v1377
        %v1383 = vlaneseq
        %v1384 = vshrl.u32 %v1383, 7
        %v1385 = vsub.s32 %v1268, %v1384
        %v1386 = vrot.slane %v1164, %v1385
        %v1387 = vlaneseq
        %v1388 = vshrl.u32 %v1387, 7
        %v1389 = vsub.s32 %v1273, %v1388
        %v1390 = vrot.slane %v1167, %v1389
        %v1391 = vsel %vm1278, %v1390, %v1386
        %v1392 = vlaneseq
        %v1393 = vshrl.u32 %v1392, 7
        %v1394 = vsub.s32 %v1280, %v1393
        %v1395 = vrot.slane %v1170, %v1394
        %v1396 = vsel %vm1285, %v1395, %v1391
        %v1397 = vlaneseq
        %v1398 = vshrl.u32 %v1397, 7
        %v1399 = vsub.s32 %v1287, %v1398
        %v1400 = vrot.slane %v1173, %v1399
        %v1401 = vsel %vm1292, %v1400, %v1396
        %v1402 = vlaneseq
        %v1403 = vshrl.u32 %v1402, 7
        %v1404 = vsub.s32 %v1294, %v1403
        %v1405 = vrot.slane %v1176, %v1404
        %v1406 = vsel %vm1299, %v1405, %v1401
        %v1407 = vlaneseq
        %v1408 = vshrl.u32 %v1407, 7
        %v1409 = vsub.s32 %v1301, %v1408
        %v1410 = vrot.slane %v1179, %v1409
        %v1411 = vsel %vm1306, %v1410, %v1406
        %v1412 = vlaneseq
        %v1413 = vshrl.u32 %v1412, 7
        %v1414 = vsub.s32 %v1308, %v1413
        %v1415 = vrot.slane %v1182, %v1414
        %v1416 = vsel %vm1313, %v1415, %v1411
        %v1417 = vlaneseq
        %v1418 = vshrl.u32 %v1417, 7
        %v1419 = vsub.s32 %v1268, %v1418
        %v1420 = vrot.slane %v1185, %v1419
        %v1421 = vlaneseq
        %v1422 = vshrl.u32 %v1421, 7
        %v1423 = vsub.s32 %v1273, %v1422
        %v1424 = vrot.slane %v1188, %v1423
        %v1425 = vsel %vm1278, %v1424, %v1420
        %v1426 = vlaneseq
        %v1427 = vshrl.u32 %v1426, 7
        %v1428 = vsub.s32 %v1280, %v1427
        %v1429 = vrot.slane %v1191, %v1428
        %v1430 = vsel %vm1285, %v1429, %v1425
        %v1431 = vlaneseq
        %v1432 = vshrl.u32 %v1431, 7
        %v1433 = vsub.s32 %v1287, %v1432
        %v1434 = vrot.slane %v1194, %v1433
        %v1435 = vsel %vm1292, %v1434, %v1430
        %v1436 = vlaneseq
        %v1437 = vshrl.u32 %v1436, 7
        %v1438 = vsub.s32 %v1294, %v1437
        %v1439 = vrot.slane %v1197, %v1438
        %v1440 = vsel %vm1299, %v1439, %v1435
        %v1441 = vlaneseq
        %v1442 = vshrl.u32 %v1441, 7
        %v1443 = vsub.s32 %v1301, %v1442
        %v1444 = vrot.slane %v1200, %v1443
        %v1445 = vsel %vm1306, %v1444, %v1440
        %v1446 = vlaneseq
        %v1447 = vshrl.u32 %v1446, 7
        %v1448 = vsub.s32 %v1308, %v1447
        %v1449 = vrot.slane %v1203, %v1448
        %v1450 = vsel %vm1313, %v1449, %v1445
        %v1451 = vlaneseq
        %v1452 = vshrl.u32 %v1451, 7
        %v1453 = vsub.s32 %v1268, %v1452
        %v1454 = vrot.slane %v1206, %v1453
        %v1455 = vlaneseq
        %v1456 = vshrl.u32 %v1455, 7
        %v1457 = vsub.s32 %v1273, %v1456
        %v1458 = vrot.slane %v1209, %v1457
        %v1459 = vsel %vm1278, %v1458, %v1454
        %v1460 = vlaneseq
        %v1461 = vshrl.u32 %v1460, 7
        %v1462 = vsub.s32 %v1280, %v1461
        %v1463 = vrot.slane %v1212, %v1462
        %v1464 = vsel %vm1285, %v1463, %v1459
        %v1465 = vlaneseq
        %v1466 = vshrl.u32 %v1465, 7
        %v1467 = vsub.s32 %v1287, %v1466
        %v1468 = vrot.slane %v1215, %v1467
        %v1469 = vsel %vm1292, %v1468, %v1464
        %v1470 = vlaneseq
        %v1471 = vshrl.u32 %v1470, 7
        %v1472 = vsub.s32 %v1294, %v1471
        %v1473 = vrot.slane %v1218, %v1472
        %v1474 = vsel %vm1299, %v1473, %v1469
        %v1475 = vlaneseq
        %v1476 = vshrl.u32 %v1475, 7
        %v1477 = vsub.s32 %v1301, %v1476
        %v1478 = vrot.slane %v1221, %v1477
        %v1479 = vsel %vm1306, %v1478, %v1474
        %v1480 = vlaneseq
        %v1481 = vshrl.u32 %v1480, 7
        %v1482 = vsub.s32 %v1308, %v1481
        %v1483 = vrot.slane %v1224, %v1482
        %v1484 = vsel %vm1313, %v1483, %v1479
        %v1485 = vlaneseq
        %v1486 = vshrl.u32 %v1485, 7
        %v1487 = vsub.s32 %v1268, %v1486
        %v1488 = vrot.slane %v1227, %v1487
        %v1489 = vlaneseq
        %v1490 = vshrl.u32 %v1489, 7
        %v1491 = vsub.s32 %v1273, %v1490
        %v1492 = vrot.slane %v1230, %v1491
        %v1493 = vsel %vm1278, %v1492, %v1488
        %v1494 = vlaneseq
        %v1495 = vshrl.u32 %v1494, 7
        %v1496 = vsub.s32 %v1280, %v1495
        %v1497 = vrot.slane %v1233, %v1496
        %v1498 = vsel %vm1285, %v1497, %v1493
        %v1499 = vlaneseq
        %v1500 = vshrl.u32 %v1499, 7
        %v1501 = vsub.s32 %v1287, %v1500
        %v1502 = vrot.slane %v1236, %v1501
        %v1503 = vsel %vm1292, %v1502, %v1498
        %v1504 = vlaneseq
        %v1505 = vshrl.u32 %v1504, 7
        %v1506 = vsub.s32 %v1294, %v1505
        %v1507 = vrot.slane %v1239, %v1506
        %v1508 = vsel %vm1299, %v1507, %v1503
        %v1509 = vlaneseq
        %v1510 = vshrl.u32 %v1509, 7
        %v1511 = vsub.s32 %v1301, %v1510
        %v1512 = vrot.slane %v1242, %v1511
        %v1513 = vsel %vm1306, %v1512, %v1508
        %v1514 = vlaneseq
        %v1515 = vshrl.u32 %v1514, 7
        %v1516 = vsub.s32 %v1308, %v1515
        %v1517 = vrot.slane %v1245, %v1516
        %v1518 = vsel %vm1313, %v1517, %v1513
        %v1519 = vlaneseq
        %v1520 = vshrl.u32 %v1519, 7
        %v1521 = vsub.s32 %v1268, %v1520
        %v1522 = vrot.slane %v1248, %v1521
        %v1523 = vlaneseq
        %v1524 = vshrl.u32 %v1523, 7
        %v1525 = vsub.s32 %v1273, %v1524
        %v1526 = vrot.slane %v1251, %v1525
        %v1527 = vsel %vm1278, %v1526, %v1522
        %v1528 = vlaneseq
        %v1529 = vshrl.u32 %v1528, 7
        %v1530 = vsub.s32 %v1280, %v1529
        %v1531 = vrot.slane %v1254, %v1530
        %v1532 = vsel %vm1285, %v1531, %v1527
        %v1533 = vlaneseq
        %v1534 = vshrl.u32 %v1533, 7
        %v1535 = vsub.s32 %v1287, %v1534
        %v1536 = vrot.slane %v1257, %v1535
        %v1537 = vsel %vm1292, %v1536, %v1532
        %v1538 = vlaneseq
        %v1539 = vshrl.u32 %v1538, 7
        %v1540 = vsub.s32 %v1294, %v1539
        %v1541 = vrot.slane %v1260, %v1540
        %v1542 = vsel %vm1299, %v1541, %v1537
        %v1543 = vlaneseq
        %v1544 = vshrl.u32 %v1543, 7
        %v1545 = vsub.s32 %v1301, %v1544
        %v1546 = vrot.slane %v1263, %v1545
        %v1547 = vsel %vm1306, %v1546, %v1542
        %v1548 = vlaneseq
        %v1549 = vshrl.u32 %v1548, 7
        %v1550 = vsub.s32 %v1308, %v1549
        %v1551 = vrot.slane %v1266, %v1550
        %v1552 = vsel %vm1313, %v1551, %v1547
        %vm1553 = vcmask 1041409
        %v1554 = vsel %vm1553, %v1348, %v1314
        %vm1555 = vcmask 1042434
        %v1556 = vsel %vm1555, %v1382, %v1554
        %vm1557 = vcmask 1043459
        %v1558 = vsel %vm1557, %v1416, %v1556
        %vm1559 = vcmask 1044484
        %v1560 = vsel %vm1559, %v1450, %v1558
        %vm1561 = vcmask 1045509
        %v1562 = vsel %vm1561, %v1484, %v1560
        %vm1563 = vcmask 1046534
        %v1564 = vsel %vm1563, %v1518, %v1562
        %vm1565 = vcmask 1047559
        %v1566 = vsel %vm1565, %v1552, %v1564
        %vm1568 = vcmask 408576
        %1569 = vst.msk [vmem:[%s132] sm:$0xff] %vm1568, %v1566
        %s1570 = sand.u32 %s52, 1
        %s1571 = scalar_lea.sflag [#allocation4], %s1570
        %s1572 = sand.u32 %s52, 1
        %s1573 = smul.addr %s1572, 8
        %s1574 = scalar_lea.vmem [#allocation5], %s1573
        // Predicated region
        $region29: #{tpu_custom_call.1} parent=23 // pred_check
          %p1575 = pneg %p62
        $region30: #{tpu_custom_call.1} parent=23 // pred_check_branch
          %1577 = sbr.rel (%p1575) target = $region32
        $region31: #{tpu_custom_call.1} parent=23 // pred_region
          %s1579 = ssub.s32 128, 128
          %1580 = vsyncadd %s1571, %s1579
          %s1581 = smul.addr %s18, 128
          %s1582 = scalar_lea.hbm %s1, %s1581
          %s1584 = sshll.u32 %s1574, 4
          %s1585 = int_to_ptr.vmem [resolvable:$true] %s1584
          %1587 = dma.vmem_to_hbm [thread:$0]  %s1585, 128, %s1582, %s1571
        $region32: #{tpu_custom_call.1} parent=23 // pred_fallthru
          _
      $region24: #{tpu_custom_call.1} parent=5 // pred_fallthru
        _
      %p1588 = scmp.le.s32.totalorder 2, %s13
      // Predicated region
      $region33: #{tpu_custom_call.1} parent=5 // pred_check
        %p1589 = pneg %p1588
      $region34: #{tpu_custom_call.1} parent=5 // pred_check_branch
        %1591 = sbr.rel (%p1589) target = $region36
      $region35: #{tpu_custom_call.1} parent=5 // pred_region
        %s1592 = ssub.s32 %s13, 2
        // Predicated region
        $region37: #{tpu_custom_call.1} parent=35 // pred_check
          %p1593 = pneg %p68
        $region38: #{tpu_custom_call.1} parent=35 // pred_check_branch
          %1595 = sbr.rel (%p1593) target = $region40
        $region39: #{tpu_custom_call.1} parent=35 // pred_region
          %s1596 = sand.u32 %s53, 1
          %s1597 = scalar_lea.sflag [#allocation4], %s1596
          %s1598 = sand.u32 %s53, 1
          %s1599 = smul.addr %s1598, 8
          %s1600 = scalar_lea.vmem [#allocation5], %s1599
          %1601 = dma.done %s1597, 128
        $region40: #{tpu_custom_call.1} parent=35 // pred_fallthru
          _
      $region36: #{tpu_custom_call.1} parent=5 // pred_fallthru
        _
    $region6: #{tpu_custom_call.1} parent=1 // loop_footer
      %s17 = sadd.s32 1, %s13
    $region7: #{tpu_custom_call.1} parent=1 // loop_footer_branch
      %12 = sbr.rel target = $region3
    $region8: #{tpu_custom_call.1} parent=1 // loop_exit
      _
    %1602 = vsyncpa [#allocation3], 1
    %s1603 = scalar_lea.sflag [#allocation3], 1
    %1604 = vsyncpa %s1603, 1
    %1605 = vsyncpa [#allocation4], 1
    %s1606 = scalar_lea.sflag [#allocation4], 1
    %1607 = vsyncpa %s1606, 1

</llo_original>
